<compile_context>
chip_gen: v5e
topology: v5e:2x2
jax: 0.10.0
libtpu: 0.0.40
codegen_flags: <defaults>
</compile_context>

<pallas_src>
import math

import jax
import jax.numpy as jnp
from jax import lax
from jax.experimental import pallas as pl
from jax.experimental.pallas import tpu as pltpu


def _attention_kernel(pu_ref, mp_ref, w_ref, b_ref, out_ref):
    pu = pu_ref[...].astype(jnp.float32)        # (TB, D)
    mp = mp_ref[...].astype(jnp.float32)        # (TB, n_k, D)
    w = w_ref[...].astype(jnp.float32)          # (n_k, n_k)  PyTorch Linear layout (out, in)
    b_col = b_ref[...].astype(jnp.float32)      # (n_k, 1)

    d = pu.shape[-1]
    eps = float(d) * 1e-5  # hoisted per-element epsilon: sum(x^2 + 1e-5) == sum(x^2) + D*1e-5

    # Squared norms (one reduce per sample for pu; no materialized expanded_pu).
    q2 = jnp.sum(pu * pu, axis=-1, keepdims=True) + eps        # (TB, 1)
    d2 = jnp.sum(mp * mp, axis=-1) + eps                       # (TB, n_k)

    # prod[s, k] = sum_d pu[s, d] * mp[s, k, d]
    prod = jnp.sum(pu[:, None, :] * mp, axis=-1)               # (TB, n_k)

    # cos = prod / (sqrt(q2) * sqrt(d2))  ->  prod * rsqrt(q2 * d2)   (EUP rsqrt)
    cos = prod * lax.rsqrt(q2 * d2)                            # (TB, n_k)

    # Linear(n_k, n_k), emitted TRANSPOSED: contract w's input axis with cos's n_k axis
    # (trans_b matmul) so the otherwise-idle MXU produces the lane-dense (n_k, TB)
    # layout directly -- no explicit in-kernel transpose, and the downstream
    # relu/softmax + output stores are fully lane-dense.
    y = lax.dot_general(
        w, cos,
        dimension_numbers=(((1,), (1,)), ((), ())),
        precision=lax.Precision.HIGHEST,
        preferred_element_type=jnp.float32,
    ) + b_col                                                  # (n_k, TB)

    # ReLU + softmax over the n_k (sublane) axis.
    y = jnp.maximum(y, 0.0)
    m = jnp.max(y, axis=0, keepdims=True)                      # (1, TB)
    e = jnp.exp(y - m)                                         # (n_k, TB)  (EUP)
    s = jnp.sum(e, axis=0, keepdims=True)                      # (1, TB)
    inv = pl.reciprocal(s, approx=True)                        # EUP vrcp
    inv = inv * (2.0 - s * inv)                                 # 1 Newton step: ~free, f32 accuracy
    out_ref[...] = e * inv                                     # (n_k, TB), lane-dense store


def _choose_tiling(B, batch_tile):
    """Return (batch tile, padded batch).

    Large B: tiles are multiples of 128 (lane-dense (n_k, tb) output blocks), grid kept
    even and >= 2 so v7x's two TensorCores both get work (no-op on v5e/v6e).
    Small B: a single padded block -- the output block's minor dim may only be a
    non-multiple of 128 when it spans the whole (padded) batch.
    """
    batch_tile = max(128, (int(batch_tile) // 128) * 128)
    if B >= 256:
        n_tiles = 2 * max(1, -(-B // (2 * batch_tile)))   # even, >= 2
        per_tile = -(-B // n_tiles)
        tb = -(-per_tile // 128) * 128
        return tb, n_tiles * tb
    b_pad = -(-B // 8) * 8
    return b_pad, b_pad


def attention_forward_batched(pu_b, mp_b, w, b, *, batch_tile=512):
    """pu_b: (B, D), mp_b: (B, n_k, D), w: (n_k, n_k), b: (n_k,) -> (B, n_k) float32.

    pu_b / mp_b may be bf16 (recommended: halves the mp HBM traffic); compute is f32.
    """
    B, D = pu_b.shape
    _, n_k, _ = mp_b.shape
    tb, b_pad = _choose_tiling(B, batch_tile)
    n_tiles = b_pad // tb

    if b_pad != B:  # zero-pad ragged batches; eps keeps padded norms > 0 (no NaN/Inf)
        pu_b = jnp.pad(pu_b, ((0, b_pad - B), (0, 0)))
        mp_b = jnp.pad(mp_b, ((0, b_pad - B), (0, 0), (0, 0)))

    w = w.astype(jnp.float32)
    b_col = b.reshape(n_k, 1).astype(jnp.float32)

    out_t = pl.pallas_call(
        _attention_kernel,
        out_shape=jax.ShapeDtypeStruct((n_k, b_pad), jnp.float32),
        grid=(n_tiles,),
        in_specs=[
            pl.BlockSpec((tb, D), lambda i: (i, 0)),            # pu : batch-tiled
            pl.BlockSpec((tb, n_k, D), lambda i: (i, 0, 0)),    # mp : batch-tiled (dominant DMA)
            pl.BlockSpec((n_k, n_k), lambda i: (0, 0)),         # W  : constant block -> resident
            pl.BlockSpec((n_k, 1), lambda i: (0, 0)),           # b  : constant block -> resident
        ],
        out_specs=pl.BlockSpec((n_k, tb), lambda i: (0, i)),    # transposed, lane-dense slab
        compiler_params=pltpu.CompilerParams(
            dimension_semantics=("parallel",),      # even batch grid splits across v7x's 2 TCs
            vmem_limit_bytes=32 * 1024 * 1024,      # explicit cap; default tiles use only ~1-2 MiB
        ),
    )(pu_b, mp_b, w, b_col)

    # Tiny wrapper-side un-transpose (B * n_k elements; mp DMA dominates by >= 64x).
    return out_t[:, :B].T


def attention_forward(pu, mp, w, b):
    """Single-sample path matching Attention.forward: pu (1, D), mp (n_k, D) -> (n_k,)."""
    n_k, D = mp.shape
    out = attention_forward_batched(pu.reshape(1, D), mp.reshape(1, n_k, D), w, b)
    return out[0]


def attention_reference(pu, mp, w, b):
    """Pure-JAX reference mirroring the PyTorch forward (single sample)."""
    pu = pu.astype(jnp.float32)
    mp = mp.astype(jnp.float32)
    exp_pu = jnp.broadcast_to(pu, mp.shape)
    q_norm = jnp.sqrt(jnp.sum(exp_pu ** 2 + 1e-5, axis=1))
    d_norm = jnp.sqrt(jnp.sum(mp ** 2 + 1e-5, axis=1))
    prod = jnp.sum(exp_pu * mp, axis=1)
    cos = prod / (q_norm * d_norm)
    y = jnp.maximum(cos @ w.T + b, 0.0)
    return jax.nn.softmax(y)


if __name__ == "__main__":
    n_k = 8     # number of memory rows (== Linear in/out features)
    D = 32      # embedding dim

    key = jax.random.PRNGKey(0)
    k_pu, k_mp, k_w, k_b, k_pu2, k_mp2 = jax.random.split(key, 6)

    # Deterministic parameter init (PyTorch Linear default: U(-1/sqrt(in), 1/sqrt(in)))
    bound = 1.0 / math.sqrt(n_k)
    w = jax.random.uniform(k_w, (n_k, n_k), jnp.float32, minval=-bound, maxval=bound)
    b = jax.random.uniform(k_b, (n_k,), jnp.float32, minval=-bound, maxval=bound)

    # --- small batch: single-block path ---------------------------------------
    B1 = 16
    pu1 = jax.random.normal(k_pu, (B1, D), jnp.float32).astype(jnp.bfloat16)   # bf16 feed
    mp1 = jax.random.normal(k_mp, (B1, n_k, D), jnp.float32).astype(jnp.bfloat16)
    out1 = attention_forward_batched(pu1, mp1, w, b)
    jax.block_until_ready(out1)
    ref1 = jax.vmap(lambda p, m: attention_reference(p[None, :], m, w, b))(pu1, mp1)
    assert out1.shape == (B1, n_k)
    assert jnp.allclose(out1, ref1, atol=1e-4, rtol=1e-4), (out1, ref1)
    assert jnp.allclose(jnp.sum(out1, axis=-1), 1.0, atol=1e-4)

    # --- larger batch: multi-tile, lane-dense (128-wide) output blocks ---------
    B2 = 256
    pu2 = jax.random.normal(k_pu2, (B2, D), jnp.float32).astype(jnp.bfloat16)
    mp2 = jax.random.normal(k_mp2, (B2, n_k, D), jnp.float32).astype(jnp.bfloat16)
    out2 = attention_forward_batched(pu2, mp2, w, b, batch_tile=512)
    jax.block_until_ready(out2)
    ref2 = jax.vmap(lambda p, m: attention_reference(p[None, :], m, w, b))(pu2, mp2)
    assert out2.shape == (B2, n_k)
    assert jnp.allclose(out2, ref2, atol=1e-4, rtol=1e-4), (out2, ref2)
    assert jnp.allclose(jnp.sum(out2, axis=-1), 1.0, atol=1e-4)

    # --- exact single-sample contract of the PyTorch module --------------------
    out_s = attention_forward(pu1[:1], mp1[0], w, b)
    jax.block_until_ready(out_s)
    ref_s = attention_reference(pu1[:1], mp1[0], w, b)
    assert out_s.shape == (n_k,)
    assert jnp.allclose(out_s, ref_s, atol=1e-4, rtol=1e-4), (out_s, ref_s)

    print("KERNEL_OK")
</pallas_src>

<mosaic_0001>
module attributes {stable_mosaic.version = 11 : i64} {
  func.func @_attention_kernel(%arg0: i32, %arg1: memref<16x32xbf16, #tpu.memory_space<vmem>>, %arg2: memref<16x8x32xbf16, #tpu.memory_space<vmem>>, %arg3: memref<8x8xf32, #tpu.memory_space<vmem>>, %arg4: memref<8x1xf32, #tpu.memory_space<vmem>>, %arg5: memref<8x16xf32, #tpu.memory_space<vmem>>) attributes {dimension_semantics = [#tpu.dimension_semantics<parallel>], iteration_bounds = array<i64: 1>, scalar_prefetch = 0 : i64, scratch_operands = 0 : i64, tpu.core_type = #tpu.core_type<tc>, window_params = [{transform_indices = @transform_0, window_bounds = array<i64: 16, 32>}, {transform_indices = @transform_1, window_bounds = array<i64: 16, 8, 32>}, {pipeline_mode = #tpu.pipeline_mode<synchronous>, transform_indices = @transform_2, window_bounds = array<i64: 8, 8>}, {pipeline_mode = #tpu.pipeline_mode<synchronous>, transform_indices = @transform_3, window_bounds = array<i64: 8, 1>}, {transform_indices = @transform_4, window_bounds = array<i64: 8, 16>}]} {
    %c0 = arith.constant 0 : index
    %c0_0 = arith.constant 0 : index
    %0 = vector.load %arg1[%c0, %c0_0] : memref<16x32xbf16, #tpu.memory_space<vmem>>, vector<16x32xbf16>
    %1 = arith.extf %0 : vector<16x32xbf16> to vector<16x32xf32>
    %c0_1 = arith.constant 0 : index
    %c0_2 = arith.constant 0 : index
    %c0_3 = arith.constant 0 : index
    %2 = vector.load %arg2[%c0_1, %c0_2, %c0_3] : memref<16x8x32xbf16, #tpu.memory_space<vmem>>, vector<16x8x32xbf16>
    %3 = arith.extf %2 : vector<16x8x32xbf16> to vector<16x8x32xf32>
    %c0_4 = arith.constant 0 : index
    %c0_5 = arith.constant 0 : index
    %4 = vector.load %arg3[%c0_4, %c0_5] : memref<8x8xf32, #tpu.memory_space<vmem>>, vector<8x8xf32>
    %c0_6 = arith.constant 0 : index
    %c0_7 = arith.constant 0 : index
    %5 = vector.load %arg4[%c0_6, %c0_7] : memref<8x1xf32, #tpu.memory_space<vmem>>, vector<8x1xf32>
    %6 = arith.mulf %1, %1 : vector<16x32xf32>
    %cst = arith.constant dense<0.000000e+00> : vector<16xf32>
    %7 = vector.multi_reduction <add>, %6, %cst [1] : vector<16x32xf32> to vector<16xf32>
    %8 = vector.shape_cast %7 : vector<16xf32> to vector<16x1xf32>
    %cst_8 = arith.constant 3.200000e-04 : f32
    %9 = vector.broadcast %cst_8 : f32 to vector<16x1xf32>
    %10 = arith.addf %8, %9 : vector<16x1xf32>
    %11 = arith.mulf %3, %3 : vector<16x8x32xf32>
    %cst_9 = arith.constant dense<0.000000e+00> : vector<16x8xf32>
    %12 = vector.multi_reduction <add>, %11, %cst_9 [2] : vector<16x8x32xf32> to vector<16x8xf32>
    %cst_10 = arith.constant 3.200000e-04 : f32
    %13 = vector.broadcast %cst_10 : f32 to vector<16x8xf32>
    %14 = arith.addf %12, %13 : vector<16x8xf32>
    %15 = vector.shape_cast %1 : vector<16x32xf32> to vector<16x1x32xf32>
    %16 = vector.broadcast %15 : vector<16x1x32xf32> to vector<16x8x32xf32>
    %17 = arith.mulf %16, %3 : vector<16x8x32xf32>
    %cst_11 = arith.constant dense<0.000000e+00> : vector<16x8xf32>
    %18 = vector.multi_reduction <add>, %17, %cst_11 [2] : vector<16x8x32xf32> to vector<16x8xf32>
    %19 = vector.broadcast %10 : vector<16x1xf32> to vector<16x8xf32>
    %20 = arith.mulf %19, %14 : vector<16x8xf32>
    %21 = math.rsqrt %20 : vector<16x8xf32>
    %22 = arith.mulf %18, %21 : vector<16x8xf32>
    %cst_12 = arith.constant dense<0.000000e+00> : vector<8x16xf32>
    %23 = tpu.matmul %4, %22, %cst_12 {dimension_numbers = #tpu.dot_dimension_numbers<[1], [1], [0], [0], [0, 0, 1, 0], [], []>, precision = #tpu.contract_precision<fp32>} : vector<8x8xf32>, vector<16x8xf32>, vector<8x16xf32> -> vector<8x16xf32>
    %24 = vector.broadcast %5 : vector<8x1xf32> to vector<8x16xf32>
    %25 = arith.addf %23, %24 : vector<8x16xf32>
    %cst_13 = arith.constant 0.000000e+00 : f32
    %26 = vector.broadcast %cst_13 : f32 to vector<8x16xf32>
    %27 = arith.maximumf %25, %26 : vector<8x16xf32>
    %cst_14 = arith.constant dense<0xFF800000> : vector<16xf32>
    %28 = vector.multi_reduction <maximumf>, %27, %cst_14 [0] : vector<8x16xf32> to vector<16xf32>
    %29 = vector.shape_cast %28 : vector<16xf32> to vector<1x16xf32>
    %30 = vector.broadcast %29 : vector<1x16xf32> to vector<8x16xf32>
    %31 = arith.subf %27, %30 : vector<8x16xf32>
    %32 = math.exp %31 : vector<8x16xf32>
    %cst_15 = arith.constant dense<0.000000e+00> : vector<16xf32>
    %33 = vector.multi_reduction <add>, %32, %cst_15 [0] : vector<8x16xf32> to vector<16xf32>
    %34 = vector.shape_cast %33 : vector<16xf32> to vector<1x16xf32>
    %35 = tpu.reciprocal %34 {approx = true} : vector<1x16xf32> -> vector<1x16xf32>
    %36 = arith.mulf %34, %35 : vector<1x16xf32>
    %cst_16 = arith.constant 2.000000e+00 : f32
    %37 = vector.broadcast %cst_16 : f32 to vector<1x16xf32>
    %38 = arith.subf %37, %36 : vector<1x16xf32>
    %39 = arith.mulf %35, %38 : vector<1x16xf32>
    %40 = vector.broadcast %39 : vector<1x16xf32> to vector<8x16xf32>
    %41 = arith.mulf %32, %40 : vector<8x16xf32>
    %c0_17 = arith.constant 0 : index
    %c0_18 = arith.constant 0 : index
    %42 = vector.load %arg5[%c0_17, %c0_18] : memref<8x16xf32, #tpu.memory_space<vmem>>, vector<8x16xf32>
    tpu.vector_store %arg5[%c0_17, %c0_18], %41 {strides = array<i32>} : memref<8x16xf32, #tpu.memory_space<vmem>>, vector<8x16xf32>,
    return
  }
  func.func @transform_0(%arg0: i32) -> (i32, i32) {
    %c0_i32 = arith.constant 0 : i32
    %c0_i32_0 = arith.constant 0 : i32
    return %arg0, %c0_i32 : i32, i32
  }
  func.func @transform_1(%arg0: i32) -> (i32, i32, i32) {
    %c0_i32 = arith.constant 0 : i32
    %c0_i32_0 = arith.constant 0 : i32
    %c0_i32_1 = arith.constant 0 : i32
    return %arg0, %c0_i32, %c0_i32_0 : i32, i32, i32
  }
  func.func @transform_2(%arg0: i32) -> (i32, i32) {
    %c0_i32 = arith.constant 0 : i32
    %c0_i32_0 = arith.constant 0 : i32
    %c0_i32_1 = arith.constant 0 : i32
    return %c0_i32, %c0_i32_0 : i32, i32
  }
  func.func @transform_3(%arg0: i32) -> (i32, i32) {
    %c0_i32 = arith.constant 0 : i32
    %c0_i32_0 = arith.constant 0 : i32
    %c0_i32_1 = arith.constant 0 : i32
    return %c0_i32, %c0_i32_0 : i32, i32
  }
  func.func @transform_4(%arg0: i32) -> (i32, i32) {
    %c0_i32 = arith.constant 0 : i32
    %c0_i32_0 = arith.constant 0 : i32
    return %c0_i32, %arg0 : i32, i32
  }
}

</mosaic_0001>

<llo_original>
// kernel: tpu_custom_call.1
$region0: #{tpu_custom_call.1}
  #allocation0 [shape = 'u32[]', space=smem, size = 0x4, offset = 0x4, fixed_abs, tag = 'smem constant byte address 0x4 - core index']
  #allocation1 [shape = 'u32[72,128]{1,0:T(1,128)}', space=vmem, size = 0x9000, scoped, tag = 'internal scratch']
  %s0 = inlined_call_operand.vmem [shape: bf16[16,32], index: 0, kind: input, shape index: {}]
  %s1 = inlined_call_operand.hbm [shape: bf16[16,8,32], index: 1, kind: input, shape index: {}]
  %s2 = inlined_call_operand.hbm [shape: f32[8,8], index: 2, kind: input, shape index: {}]
  %s3 = inlined_call_operand.vmem [shape: f32[8,1], index: 3, kind: input, shape index: {}]
  %s4 = inlined_call_operand.hbm [shape: f32[8,16], index: 4, kind: output, shape index: {}]
  %s5 = sld [smem:[#allocation0]]
  $region34: #{tpu_custom_call.1} parent=0
    _
  %s7 = ssub.s32 1, %s5
  %s8 = scalar_select 0, %s7, %s5
  $region1: #{tpu_custom_call.1} parent=0
    #allocation2 [shape = 'u8[32768]{0}', space=vmem, size = 0x8000, scoped, tag = 'input window, operand 1, single buffered']
    #allocation3 [shape = 's32[1]{0}', space=sflag, size = 0x4, scoped, tag = 'scoped memory for tpu_custom_call.1']
    #allocation4 [shape = 's32[1]{0}', space=sflag, size = 0x4, scoped, tag = 'scoped memory for tpu_custom_call.1']
    #allocation5 [shape = 'u8[4096]{0}', space=vmem, size = 0x1000, scoped, tag = 'input window, operand 2, single buffered']
    #allocation6 [shape = 's32[1]{0}', space=sflag, size = 0x4, scoped, tag = 'scoped memory for tpu_custom_call.1']
    #allocation7 [shape = 'u8[4096]{0}', space=vmem, size = 0x1000, scoped, tag = 'output window, operand 0, single buffered']
    %9 = vsyncpa [#allocation3], 0
    %10 = vsyncpa [#allocation6], 0
    %11 = vsyncpa [#allocation4], 0
    // Predicated region
    $region2: #{tpu_custom_call.1} parent=1 // pred_check
      _
    $region3: #{tpu_custom_call.1} parent=1 // pred_check_branch
      %13 = sbr.rel (0) target = $region5
    $region4: #{tpu_custom_call.1} parent=1 // pred_region
      _
    $region5: #{tpu_custom_call.1} parent=1 // pred_fallthru
      _
    // Predicated region
    $region6: #{tpu_custom_call.1} parent=1 // pred_check
      _
    $region7: #{tpu_custom_call.1} parent=1 // pred_check_branch
      %15 = sbr.rel (0) target = $region9
    $region8: #{tpu_custom_call.1} parent=1 // pred_region
      %17 = vsyncadd [#allocation3], 0
      %s18 = sshll.u32 %s1, 4
      %s19 = int_to_ptr.hbm [resolvable:$true] %s18
      %s20 = sshll.u32 [#allocation2], 4
      %s21 = int_to_ptr.vmem [resolvable:$true] %s20
      %26 = dma.hbm_to_vmem [thread:$0]  %s19, 1024, %s21, [#allocation3], 64, 64, 4
    $region9: #{tpu_custom_call.1} parent=1 // pred_fallthru
      _
    // Predicated region
    $region10: #{tpu_custom_call.1} parent=1 // pred_check
      _
    $region11: #{tpu_custom_call.1} parent=1 // pred_check_branch
      %28 = sbr.rel (0) target = $region13
    $region12: #{tpu_custom_call.1} parent=1 // pred_region
      %30 = vsyncadd [#allocation6], 0
      %s32 = sshll.u32 %s2, 4
      %s33 = int_to_ptr.hbm [resolvable:$true] %s32
      %s34 = sshll.u32 [#allocation5], 4
      %s35 = int_to_ptr.vmem [resolvable:$true] %s34
      %37 = dma.hbm_to_vmem [thread:$0]  %s33, 128, %s35, [#allocation6]
    $region13: #{tpu_custom_call.1} parent=1 // pred_fallthru
      _
    // Predicated region
    $region14: #{tpu_custom_call.1} parent=1 // pred_check
      _
    $region15: #{tpu_custom_call.1} parent=1 // pred_check_branch
      %39 = sbr.rel (0) target = $region17
    $region16: #{tpu_custom_call.1} parent=1 // pred_region
      _
    $region17: #{tpu_custom_call.1} parent=1 // pred_fallthru
      _
    // Predicated region
    $region18: #{tpu_custom_call.1} parent=1 // pred_check
      _
    $region19: #{tpu_custom_call.1} parent=1 // pred_check_branch
      %41 = sbr.rel (0) target = $region21
    $region20: #{tpu_custom_call.1} parent=1 // pred_region
      %43 = dma.done [#allocation3], 1024
    $region21: #{tpu_custom_call.1} parent=1 // pred_fallthru
      _
    // Predicated region
    $region22: #{tpu_custom_call.1} parent=1 // pred_check
      _
    $region23: #{tpu_custom_call.1} parent=1 // pred_check_branch
      %45 = sbr.rel (0) target = $region25
    $region24: #{tpu_custom_call.1} parent=1 // pred_region
      %47 = dma.done [#allocation6], 128
    $region25: #{tpu_custom_call.1} parent=1 // pred_fallthru
      _
    %v48 = vld [vmem:[%s0] sm:$0xf]
    %v49 = vld [vmem:[%s0 + $0x4] sm:$0xf]
    %v50 = vunpack.c.l.bf16 %v48
    %v51 = vunpack.c.l.bf16 %v49
    %v52 = vld [vmem:[#allocation2] sm:$0xf]
    %v53 = vld [vmem:[#allocation2 + $0x4] sm:$0xf]
    %v54 = vld [vmem:[#allocation2 + $0x8] sm:$0xf]
    %v55 = vld [vmem:[#allocation2 + $0xc] sm:$0xf]
    %v56 = vld [vmem:[#allocation2 + $0x10] sm:$0xf]
    %v57 = vld [vmem:[#allocation2 + $0x14] sm:$0xf]
    %v58 = vld [vmem:[#allocation2 + $0x18] sm:$0xf]
    %v59 = vld [vmem:[#allocation2 + $0x1c] sm:$0xf]
    %v60 = vld [vmem:[#allocation2 + $0x20] sm:$0xf]
    %v61 = vld [vmem:[#allocation2 + $0x24] sm:$0xf]
    %v62 = vld [vmem:[#allocation2 + $0x28] sm:$0xf]
    %v63 = vld [vmem:[#allocation2 + $0x2c] sm:$0xf]
    %v64 = vld [vmem:[#allocation2 + $0x30] sm:$0xf]
    %v65 = vld [vmem:[#allocation2 + $0x34] sm:$0xf]
    %v66 = vld [vmem:[#allocation2 + $0x38] sm:$0xf]
    %v67 = vld [vmem:[#allocation2 + $0x3c] sm:$0xf]
    %v68 = vunpack.c.l.bf16 %v52
    %v69 = vunpack.c.l.bf16 %v53
    %v70 = vunpack.c.l.bf16 %v54
    %v71 = vunpack.c.l.bf16 %v55
    %v72 = vunpack.c.l.bf16 %v56
    %v73 = vunpack.c.l.bf16 %v57
    %v74 = vunpack.c.l.bf16 %v58
    %v75 = vunpack.c.l.bf16 %v59
    %v76 = vunpack.c.l.bf16 %v60
    %v77 = vunpack.c.l.bf16 %v61
    %v78 = vunpack.c.l.bf16 %v62
    %v79 = vunpack.c.l.bf16 %v63
    %v80 = vunpack.c.l.bf16 %v64
    %v81 = vunpack.c.l.bf16 %v65
    %v82 = vunpack.c.l.bf16 %v66
    %v83 = vunpack.c.l.bf16 %v67
    %v84 = vld [vmem:[#allocation5] sm:$0xff]
    %v85 = vld [vmem:[%s3] sm:$0xff]
    %v86 = vmul.f32 %v50, %v50
    %v87 = vmul.f32 %v51, %v51
    %vm88 = vcmask 261120
    %v89 = vsel %vm88, %v86, 0.0
    %90 = vadd.xlane.f32.xlu0 %v89
    %v91 = vpop.xlane.xlu0 %90
    %v92 = vsel %vm88, %v87, 0.0
    %93 = vadd.xlane.f32.xlu0 %v92
    %v94 = vpop.xlane.xlu0 %93
    %v95 = vadd.f32 %v91, 0.00032
    %v96 = vadd.f32 %v94, 0.00032
    %v97 = vmul.f32 %v68, %v68
    %v98 = vmul.f32 %v69, %v69
    %v99 = vmul.f32 %v70, %v70
    %v100 = vmul.f32 %v71, %v71
    %v101 = vmul.f32 %v72, %v72
    %v102 = vmul.f32 %v73, %v73
    %v103 = vmul.f32 %v74, %v74
    %v104 = vmul.f32 %v75, %v75
    %v105 = vmul.f32 %v76, %v76
    %v106 = vmul.f32 %v77, %v77
    %v107 = vmul.f32 %v78, %v78
    %v108 = vmul.f32 %v79, %v79
    %v109 = vmul.f32 %v80, %v80
    %v110 = vmul.f32 %v81, %v81
    %v111 = vmul.f32 %v82, %v82
    %v112 = vmul.f32 %v83, %v83
    %v113 = vsel %vm88, %v97, 0.0
    %114 = vadd.xlane.f32.xlu0 %v113
    %v115 = vpop.xlane.xlu0 %114
    %v116 = vsel %vm88, %v98, 0.0
    %117 = vadd.xlane.f32.xlu0 %v116
    %v118 = vpop.xlane.xlu0 %117
    %v119 = vsel %vm88, %v99, 0.0
    %120 = vadd.xlane.f32.xlu0 %v119
    %v121 = vpop.xlane.xlu0 %120
    %v122 = vsel %vm88, %v100, 0.0
    %123 = vadd.xlane.f32.xlu0 %v122
    %v124 = vpop.xlane.xlu0 %123
    %v125 = vsel %vm88, %v101, 0.0
    %126 = vadd.xlane.f32.xlu0 %v125
    %v127 = vpop.xlane.xlu0 %126
    %v128 = vsel %vm88, %v102, 0.0
    %129 = vadd.xlane.f32.xlu0 %v128
    %v130 = vpop.xlane.xlu0 %129
    %v131 = vsel %vm88, %v103, 0.0
    %132 = vadd.xlane.f32.xlu0 %v131
    %v133 = vpop.xlane.xlu0 %132
    %v134 = vsel %vm88, %v104, 0.0
    %135 = vadd.xlane.f32.xlu0 %v134
    %v136 = vpop.xlane.xlu0 %135
    %v137 = vsel %vm88, %v105, 0.0
    %138 = vadd.xlane.f32.xlu0 %v137
    %v139 = vpop.xlane.xlu0 %138
    %v140 = vsel %vm88, %v106, 0.0
    %141 = vadd.xlane.f32.xlu0 %v140
    %v142 = vpop.xlane.xlu0 %141
    %v143 = vsel %vm88, %v107, 0.0
    %144 = vadd.xlane.f32.xlu0 %v143
    %v145 = vpop.xlane.xlu0 %144
    %v146 = vsel %vm88, %v108, 0.0
    %147 = vadd.xlane.f32.xlu0 %v146
    %v148 = vpop.xlane.xlu0 %147
    %v149 = vsel %vm88, %v109, 0.0
    %150 = vadd.xlane.f32.xlu0 %v149
    %v151 = vpop.xlane.xlu0 %150
    %v152 = vsel %vm88, %v110, 0.0
    %153 = vadd.xlane.f32.xlu0 %v152
    %v154 = vpop.xlane.xlu0 %153
    %v155 = vsel %vm88, %v111, 0.0
    %156 = vadd.xlane.f32.xlu0 %v155
    %v157 = vpop.xlane.xlu0 %156
    %v158 = vsel %vm88, %v112, 0.0
    %159 = vadd.xlane.f32.xlu0 %v158
    %v160 = vpop.xlane.xlu0 %159
    %v161 = vadd.f32 %v115, 0.00032
    %v162 = vadd.f32 %v118, 0.00032
    %v163 = vadd.f32 %v121, 0.00032
    %v164 = vadd.f32 %v124, 0.00032
    %v165 = vadd.f32 %v127, 0.00032
    %v166 = vadd.f32 %v130, 0.00032
    %v167 = vadd.f32 %v133, 0.00032
    %v168 = vadd.f32 %v136, 0.00032
    %v169 = vadd.f32 %v139, 0.00032
    %v170 = vadd.f32 %v142, 0.00032
    %v171 = vadd.f32 %v145, 0.00032
    %v172 = vadd.f32 %v148, 0.00032
    %v173 = vadd.f32 %v151, 0.00032
    %v174 = vadd.f32 %v154, 0.00032
    %v175 = vadd.f32 %v157, 0.00032
    %v176 = vadd.f32 %v160, 0.00032
    %v179 = vrot.slane %v50, 1
    %v180 = vrot.slane %v50, 2
    %v181 = vrot.slane %v50, 3
    %v182 = vrot.slane %v50, 4
    %v183 = vrot.slane %v50, 5
    %v184 = vrot.slane %v50, 6
    %v185 = vrot.slane %v50, 7
    %v186 = vrot.slane %v51, 1
    %v187 = vrot.slane %v51, 2
    %v188 = vrot.slane %v51, 3
    %v189 = vrot.slane %v51, 4
    %v190 = vrot.slane %v51, 5
    %v191 = vrot.slane %v51, 6
    %v192 = vrot.slane %v51, 7
    %v193 = vperm.slane %v50, 0
    %v194 = vperm.slane %v179, 0
    %v195 = vperm.slane %v180, 0
    %v196 = vperm.slane %v181, 0
    %v197 = vperm.slane %v182, 0
    %v198 = vperm.slane %v183, 0
    %v199 = vperm.slane %v184, 0
    %v200 = vperm.slane %v185, 0
    %v201 = vperm.slane %v51, 0
    %v202 = vperm.slane %v186, 0
    %v203 = vperm.slane %v187, 0
    %v204 = vperm.slane %v188, 0
    %v205 = vperm.slane %v189, 0
    %v206 = vperm.slane %v190, 0
    %v207 = vperm.slane %v191, 0
    %v208 = vperm.slane %v192, 0
    %v225 = vmul.f32 %v193, %v68
    %v226 = vmul.f32 %v194, %v69
    %v227 = vmul.f32 %v195, %v70
    %v228 = vmul.f32 %v196, %v71
    %v229 = vmul.f32 %v197, %v72
    %v230 = vmul.f32 %v198, %v73
    %v231 = vmul.f32 %v199, %v74
    %v232 = vmul.f32 %v200, %v75
    %v233 = vmul.f32 %v201, %v76
    %v234 = vmul.f32 %v202, %v77
    %v235 = vmul.f32 %v203, %v78
    %v236 = vmul.f32 %v204, %v79
    %v237 = vmul.f32 %v205, %v80
    %v238 = vmul.f32 %v206, %v81
    %v239 = vmul.f32 %v207, %v82
    %v240 = vmul.f32 %v208, %v83
    %v241 = vsel %vm88, %v225, 0.0
    %242 = vadd.xlane.f32.xlu0 %v241
    %v243 = vpop.xlane.xlu0 %242
    %v244 = vsel %vm88, %v226, 0.0
    %245 = vadd.xlane.f32.xlu0 %v244
    %v246 = vpop.xlane.xlu0 %245
    %v247 = vsel %vm88, %v227, 0.0
    %248 = vadd.xlane.f32.xlu0 %v247
    %v249 = vpop.xlane.xlu0 %248
    %v250 = vsel %vm88, %v228, 0.0
    %251 = vadd.xlane.f32.xlu0 %v250
    %v252 = vpop.xlane.xlu0 %251
    %v253 = vsel %vm88, %v229, 0.0
    %254 = vadd.xlane.f32.xlu0 %v253
    %v255 = vpop.xlane.xlu0 %254
    %v256 = vsel %vm88, %v230, 0.0
    %257 = vadd.xlane.f32.xlu0 %v256
    %v258 = vpop.xlane.xlu0 %257
    %v259 = vsel %vm88, %v231, 0.0
    %260 = vadd.xlane.f32.xlu0 %v259
    %v261 = vpop.xlane.xlu0 %260
    %v262 = vsel %vm88, %v232, 0.0
    %263 = vadd.xlane.f32.xlu0 %v262
    %v264 = vpop.xlane.xlu0 %263
    %v265 = vsel %vm88, %v233, 0.0
    %266 = vadd.xlane.f32.xlu0 %v265
    %v267 = vpop.xlane.xlu0 %266
    %v268 = vsel %vm88, %v234, 0.0
    %269 = vadd.xlane.f32.xlu0 %v268
    %v270 = vpop.xlane.xlu0 %269
    %v271 = vsel %vm88, %v235, 0.0
    %272 = vadd.xlane.f32.xlu0 %v271
    %v273 = vpop.xlane.xlu0 %272
    %v274 = vsel %vm88, %v236, 0.0
    %275 = vadd.xlane.f32.xlu0 %v274
    %v276 = vpop.xlane.xlu0 %275
    %v277 = vsel %vm88, %v237, 0.0
    %278 = vadd.xlane.f32.xlu0 %v277
    %v279 = vpop.xlane.xlu0 %278
    %v280 = vsel %vm88, %v238, 0.0
    %281 = vadd.xlane.f32.xlu0 %v280
    %v282 = vpop.xlane.xlu0 %281
    %v283 = vsel %vm88, %v239, 0.0
    %284 = vadd.xlane.f32.xlu0 %v283
    %v285 = vpop.xlane.xlu0 %284
    %v286 = vsel %vm88, %v240, 0.0
    %287 = vadd.xlane.f32.xlu0 %v286
    %v288 = vpop.xlane.xlu0 %287
    %v305 = vlaneseq
    %v306 = vand.u32 %v305, 127
    %v307 = vperm.slane %v161, %v306
    %v308 = vperm.slane %v162, %v306
    %v309 = vperm.slane %v163, %v306
    %v310 = vperm.slane %v164, %v306
    %v311 = vperm.slane %v165, %v306
    %v312 = vperm.slane %v166, %v306
    %v313 = vperm.slane %v167, %v306
    %v314 = vperm.slane %v168, %v306
    %v315 = vperm.slane %v169, %v306
    %v316 = vperm.slane %v170, %v306
    %v317 = vperm.slane %v171, %v306
    %v318 = vperm.slane %v172, %v306
    %v319 = vperm.slane %v173, %v306
    %v320 = vperm.slane %v174, %v306
    %v321 = vperm.slane %v175, %v306
    %v322 = vperm.slane %v176, %v306
    %vm323 = vcmask 1041409
    %v324 = vsel %vm323, %v308, %v307
    %vm325 = vcmask 1042434
    %v326 = vsel %vm325, %v309, %v324
    %vm327 = vcmask 1043459
    %v328 = vsel %vm327, %v310, %v326
    %vm329 = vcmask 1044484
    %v330 = vsel %vm329, %v311, %v328
    %vm331 = vcmask 1045509
    %v332 = vsel %vm331, %v312, %v330
    %vm333 = vcmask 1046534
    %v334 = vsel %vm333, %v313, %v332
    %vm335 = vcmask 1047559
    %v336 = vsel %vm335, %v314, %v334
    %v337 = vsel %vm323, %v316, %v315
    %v338 = vsel %vm325, %v317, %v337
    %v339 = vsel %vm327, %v318, %v338
    %v340 = vsel %vm329, %v319, %v339
    %v341 = vsel %vm331, %v320, %v340
    %v342 = vsel %vm333, %v321, %v341
    %v343 = vsel %vm335, %v322, %v342
    %v346 = vmul.f32 %v95, %v336
    %v347 = vmul.f32 %v96, %v343
    %v348 = vrsqrt.pop %v346
    %v349 = vmul.f32 %v348, %v346
    %v350 = vmul.f32 %v349, %v348
    %v351 = vmul.f32 0.5, %v350
    %v352 = vsub.f32 1.5, %v351
    %v353 = vmul.f32 %v348, %v352
    %vm354 = vweird.f32 %v346
    %vm355 = vweird.f32 %v348
    %vm356 = vmor %vm354, %vm355
    %v357 = vsel %vm356, %v348, %v353
    %v358 = vrsqrt.pop %v347
    %v359 = vmul.f32 %v358, %v347
    %v360 = vmul.f32 %v359, %v358
    %v361 = vmul.f32 0.5, %v360
    %v362 = vsub.f32 1.5, %v361
    %v363 = vmul.f32 %v358, %v362
    %vm364 = vweird.f32 %v347
    %vm365 = vweird.f32 %v358
    %vm366 = vmor %vm364, %vm365
    %v367 = vsel %vm366, %v358, %v363
    %v370 = vperm.slane %v357, 0
    %v371 = vlaneseq
    %v372 = vshrl.u32 %v371, 7
    %374 = vset.pattern.permute.xlu0 %v372
    %375 = vperm.xlu0 %374, %v370
    %v376 = vpop.permute.xlu0 %375
    %v377 = vperm.slane %v357, 1
    %v378 = vlaneseq
    %v379 = vshrl.u32 %v378, 7
    %381 = vset.pattern.permute.xlu0 %v379
    %382 = vperm.xlu0 %381, %v377
    %v383 = vpop.permute.xlu0 %382
    %v384 = vperm.slane %v357, 2
    %v385 = vlaneseq
    %v386 = vshrl.u32 %v385, 7
    %388 = vset.pattern.permute.xlu0 %v386
    %389 = vperm.xlu0 %388, %v384
    %v390 = vpop.permute.xlu0 %389
    %v391 = vperm.slane %v357, 3
    %v392 = vlaneseq
    %v393 = vshrl.u32 %v392, 7
    %395 = vset.pattern.permute.xlu0 %v393
    %396 = vperm.xlu0 %395, %v391
    %v397 = vpop.permute.xlu0 %396
    %v398 = vperm.slane %v357, 4
    %v399 = vlaneseq
    %v400 = vshrl.u32 %v399, 7
    %402 = vset.pattern.permute.xlu0 %v400
    %403 = vperm.xlu0 %402, %v398
    %v404 = vpop.permute.xlu0 %403
    %v405 = vperm.slane %v357, 5
    %v406 = vlaneseq
    %v407 = vshrl.u32 %v406, 7
    %409 = vset.pattern.permute.xlu0 %v407
    %410 = vperm.xlu0 %409, %v405
    %v411 = vpop.permute.xlu0 %410
    %v412 = vperm.slane %v357, 6
    %v413 = vlaneseq
    %v414 = vshrl.u32 %v413, 7
    %416 = vset.pattern.permute.xlu0 %v414
    %417 = vperm.xlu0 %416, %v412
    %v418 = vpop.permute.xlu0 %417
    %v419 = vperm.slane %v357, 7
    %v420 = vlaneseq
    %v421 = vshrl.u32 %v420, 7
    %423 = vset.pattern.permute.xlu0 %v421
    %424 = vperm.xlu0 %423, %v419
    %v425 = vpop.permute.xlu0 %424
    %v426 = vperm.slane %v367, 0
    %v427 = vlaneseq
    %v428 = vshrl.u32 %v427, 7
    %430 = vset.pattern.permute.xlu0 %v428
    %431 = vperm.xlu0 %430, %v426
    %v432 = vpop.permute.xlu0 %431
    %v433 = vperm.slane %v367, 1
    %v434 = vlaneseq
    %v435 = vshrl.u32 %v434, 7
    %437 = vset.pattern.permute.xlu0 %v435
    %438 = vperm.xlu0 %437, %v433
    %v439 = vpop.permute.xlu0 %438
    %v440 = vperm.slane %v367, 2
    %v441 = vlaneseq
    %v442 = vshrl.u32 %v441, 7
    %444 = vset.pattern.permute.xlu0 %v442
    %445 = vperm.xlu0 %444, %v440
    %v446 = vpop.permute.xlu0 %445
    %v447 = vperm.slane %v367, 3
    %v448 = vlaneseq
    %v449 = vshrl.u32 %v448, 7
    %451 = vset.pattern.permute.xlu0 %v449
    %452 = vperm.xlu0 %451, %v447
    %v453 = vpop.permute.xlu0 %452
    %v454 = vperm.slane %v367, 4
    %v455 = vlaneseq
    %v456 = vshrl.u32 %v455, 7
    %458 = vset.pattern.permute.xlu0 %v456
    %459 = vperm.xlu0 %458, %v454
    %v460 = vpop.permute.xlu0 %459
    %v461 = vperm.slane %v367, 5
    %v462 = vlaneseq
    %v463 = vshrl.u32 %v462, 7
    %465 = vset.pattern.permute.xlu0 %v463
    %466 = vperm.xlu0 %465, %v461
    %v467 = vpop.permute.xlu0 %466
    %v468 = vperm.slane %v367, 6
    %v469 = vlaneseq
    %v470 = vshrl.u32 %v469, 7
    %472 = vset.pattern.permute.xlu0 %v470
    %473 = vperm.xlu0 %472, %v468
    %v474 = vpop.permute.xlu0 %473
    %v475 = vperm.slane %v367, 7
    %v476 = vlaneseq
    %v477 = vshrl.u32 %v476, 7
    %479 = vset.pattern.permute.xlu0 %v477
    %480 = vperm.xlu0 %479, %v475
    %v481 = vpop.permute.xlu0 %480
    %v498 = vmul.f32 %v243, %v376
    %v499 = vmul.f32 %v246, %v383
    %v500 = vmul.f32 %v249, %v390
    %v501 = vmul.f32 %v252, %v397
    %v502 = vmul.f32 %v255, %v404
    %v503 = vmul.f32 %v258, %v411
    %v504 = vmul.f32 %v261, %v418
    %v505 = vmul.f32 %v264, %v425
    %v506 = vmul.f32 %v267, %v432
    %v507 = vmul.f32 %v270, %v439
    %v508 = vmul.f32 %v273, %v446
    %v509 = vmul.f32 %v276, %v453
    %v510 = vmul.f32 %v279, %v460
    %v511 = vmul.f32 %v282, %v467
    %v512 = vmul.f32 %v285, %v474
    %v513 = vmul.f32 %v288, %v481
    %515 = vset.pattern.permute.xlu0 0
    %516 = vperm.xlu0 %515, %v85
    %v517 = vpop.permute.xlu0 %516
    %535 = vset.pattern.permute.xlu0 0
    %536 = vperm.xlu0 %535, %v498
    %v537 = vpop.permute.xlu0 %536
    %538 = vset.pattern.permute.xlu0 0
    %539 = vperm.xlu0 %538, %v499
    %v540 = vpop.permute.xlu0 %539
    %541 = vset.pattern.permute.xlu0 0
    %542 = vperm.xlu0 %541, %v500
    %v543 = vpop.permute.xlu0 %542
    %544 = vset.pattern.permute.xlu0 0
    %545 = vperm.xlu0 %544, %v501
    %v546 = vpop.permute.xlu0 %545
    %547 = vset.pattern.permute.xlu0 0
    %548 = vperm.xlu0 %547, %v502
    %v549 = vpop.permute.xlu0 %548
    %550 = vset.pattern.permute.xlu0 0
    %551 = vperm.xlu0 %550, %v503
    %v552 = vpop.permute.xlu0 %551
    %553 = vset.pattern.permute.xlu0 0
    %554 = vperm.xlu0 %553, %v504
    %v555 = vpop.permute.xlu0 %554
    %556 = vset.pattern.permute.xlu0 0
    %557 = vperm.xlu0 %556, %v505
    %v558 = vpop.permute.xlu0 %557
    %559 = vset.pattern.permute.xlu0 0
    %560 = vperm.xlu0 %559, %v506
    %v561 = vpop.permute.xlu0 %560
    %562 = vset.pattern.permute.xlu0 0
    %563 = vperm.xlu0 %562, %v507
    %v564 = vpop.permute.xlu0 %563
    %565 = vset.pattern.permute.xlu0 0
    %566 = vperm.xlu0 %565, %v508
    %v567 = vpop.permute.xlu0 %566
    %568 = vset.pattern.permute.xlu0 0
    %569 = vperm.xlu0 %568, %v509
    %v570 = vpop.permute.xlu0 %569
    %571 = vset.pattern.permute.xlu0 0
    %572 = vperm.xlu0 %571, %v510
    %v573 = vpop.permute.xlu0 %572
    %574 = vset.pattern.permute.xlu0 0
    %575 = vperm.xlu0 %574, %v511
    %v576 = vpop.permute.xlu0 %575
    %577 = vset.pattern.permute.xlu0 0
    %578 = vperm.xlu0 %577, %v512
    %v579 = vpop.permute.xlu0 %578
    %580 = vset.pattern.permute.xlu0 0
    %581 = vperm.xlu0 %580, %v513
    %v582 = vpop.permute.xlu0 %581
    %v583 = vperm.slane %v537, %v306
    %v584 = vperm.slane %v540, %v306
    %v585 = vperm.slane %v543, %v306
    %v586 = vperm.slane %v546, %v306
    %v587 = vperm.slane %v549, %v306
    %v588 = vperm.slane %v552, %v306
    %v589 = vperm.slane %v555, %v306
    %v590 = vperm.slane %v558, %v306
    %v591 = vperm.slane %v561, %v306
    %v592 = vperm.slane %v564, %v306
    %v593 = vperm.slane %v567, %v306
    %v594 = vperm.slane %v570, %v306
    %v595 = vperm.slane %v573, %v306
    %v596 = vperm.slane %v576, %v306
    %v597 = vperm.slane %v579, %v306
    %v598 = vperm.slane %v582, %v306
    %v599 = vsel %vm323, %v584, %v583
    %v600 = vsel %vm325, %v585, %v599
    %v601 = vsel %vm327, %v586, %v600
    %v602 = vsel %vm329, %v587, %v601
    %v603 = vsel %vm331, %v588, %v602
    %v604 = vsel %vm333, %v589, %v603
    %v605 = vsel %vm335, %v590, %v604
    %v606 = vsel %vm323, %v592, %v591
    %v607 = vsel %vm325, %v593, %v606
    %v608 = vsel %vm327, %v594, %v607
    %v609 = vsel %vm329, %v595, %v608
    %v610 = vsel %vm331, %v596, %v609
    %v611 = vsel %vm333, %v597, %v610
    %v612 = vsel %vm335, %v598, %v611
    %vm613 = vcmask 64512
    %v615 = vsel %vm613, %v84, 0
    %v617 = vsel %vm613, %v605, 0
    %v619 = vsel %vm613, %v612, 0
    %621 = vmatpush.xpose.msra.mxu0 0.0
    %622 = vmatpush.xpose.msra.mxu0 0.0
    %623 = vmatpush.xpose.msra.mxu0 0.0
    %624 = vmatpush.xpose.msra.mxu0 0.0
    %625 = vmatpush.xpose.msra.mxu0 0.0
    %626 = vmatpush.xpose.msra.mxu0 0.0
    %627 = vmatpush.xpose.msra.mxu0 0.0
    %628 = vmatpush.xpose.msra.mxu0 0.0
    %629 = vmatpush.xpose.msra.mxu0 0.0
    %630 = vmatpush.xpose.msra.mxu0 0.0
    %631 = vmatpush.xpose.msra.mxu0 0.0
    %632 = vmatpush.xpose.msra.mxu0 0.0
    %633 = vmatpush.xpose.msra.mxu0 0.0
    %634 = vmatpush.xpose.msra.mxu0 0.0
    %v635 = vand.u32 %v619, 4294901760
    %636 = vmatpush.xpose.msra.mxu0 %v635
    %v637 = vand.u32 %v617, 4294901760
    %638 = vmatpush.xpose.msra.mxu0 %v637
    %v639 = vand.u32 %v615, 4294901760
    %v640 = vsub.f32 %v615, %v639
    %v641 = vand.u32 %v640, 4294901760
    %v642 = vsub.f32 %v640, %v641
    %v643 = vand.u32 %v642, 4294901760
    %644 = vmatmul.f32.gmra.mxu0 %v643
    %v645 = vpop.f32.mrf.mxu0
    %v646 = vadd.f32 %v517, %v645
    %647 = vdwg.mxu0
    %648 = vmatpush.xpose.msra.mxu0 0.0
    %649 = vmatpush.xpose.msra.mxu0 0.0
    %650 = vmatpush.xpose.msra.mxu0 0.0
    %651 = vmatpush.xpose.msra.mxu0 0.0
    %652 = vmatpush.xpose.msra.mxu0 0.0
    %653 = vmatpush.xpose.msra.mxu0 0.0
    %654 = vmatpush.xpose.msra.mxu0 0.0
    %655 = vmatpush.xpose.msra.mxu0 0.0
    %656 = vmatpush.xpose.msra.mxu0 0.0
    %657 = vmatpush.xpose.msra.mxu0 0.0
    %658 = vmatpush.xpose.msra.mxu0 0.0
    %659 = vmatpush.xpose.msra.mxu0 0.0
    %660 = vmatpush.xpose.msra.mxu0 0.0
    %661 = vmatpush.xpose.msra.mxu0 0.0
    %v662 = vand.u32 %v619, 4294901760
    %v663 = vsub.f32 %v619, %v662
    %v664 = vand.u32 %v663, 4294901760
    %v665 = vsub.f32 %v663, %v664
    %v666 = vand.u32 %v665, 4294901760
    %667 = vmatpush.xpose.msra.mxu0 %v666
    %v668 = vand.u32 %v617, 4294901760
    %v669 = vsub.f32 %v617, %v668
    %v670 = vand.u32 %v669, 4294901760
    %v671 = vsub.f32 %v669, %v670
    %v672 = vand.u32 %v671, 4294901760
    %673 = vmatpush.xpose.msra.mxu0 %v672
    %v674 = vand.u32 %v615, 4294901760
    %675 = vmatmul.f32.gmra.mxu0 %v674
    %v676 = vpop.f32.mrf.mxu0
    %v677 = vadd.f32 %v646, %v676
    %678 = vdwg.mxu0
    %679 = vmatpush.xpose.msra.mxu0 0.0
    %680 = vmatpush.xpose.msra.mxu0 0.0
    %681 = vmatpush.xpose.msra.mxu0 0.0
    %682 = vmatpush.xpose.msra.mxu0 0.0
    %683 = vmatpush.xpose.msra.mxu0 0.0
    %684 = vmatpush.xpose.msra.mxu0 0.0
    %685 = vmatpush.xpose.msra.mxu0 0.0
    %686 = vmatpush.xpose.msra.mxu0 0.0
    %687 = vmatpush.xpose.msra.mxu0 0.0
    %688 = vmatpush.xpose.msra.mxu0 0.0
    %689 = vmatpush.xpose.msra.mxu0 0.0
    %690 = vmatpush.xpose.msra.mxu0 0.0
    %691 = vmatpush.xpose.msra.mxu0 0.0
    %692 = vmatpush.xpose.msra.mxu0 0.0
    %v693 = vand.u32 %v619, 4294901760
    %v694 = vsub.f32 %v619, %v693
    %695 = vmatpush.xpose.msra.mxu0 %v694
    %v696 = vand.u32 %v617, 4294901760
    %v697 = vsub.f32 %v617, %v696
    %698 = vmatpush.xpose.msra.mxu0 %v697
    %v699 = vand.u32 %v615, 4294901760
    %v700 = vsub.f32 %v615, %v699
    %701 = vmatmul.f32.gmra.mxu0 %v700
    %v702 = vpop.f32.mrf.mxu0
    %v703 = vadd.f32 %v677, %v702
    %704 = vdwg.mxu0
    %705 = vmatpush.xpose.msra.mxu0 0.0
    %706 = vmatpush.xpose.msra.mxu0 0.0
    %707 = vmatpush.xpose.msra.mxu0 0.0
    %708 = vmatpush.xpose.msra.mxu0 0.0
    %709 = vmatpush.xpose.msra.mxu0 0.0
    %710 = vmatpush.xpose.msra.mxu0 0.0
    %711 = vmatpush.xpose.msra.mxu0 0.0
    %712 = vmatpush.xpose.msra.mxu0 0.0
    %713 = vmatpush.xpose.msra.mxu0 0.0
    %714 = vmatpush.xpose.msra.mxu0 0.0
    %715 = vmatpush.xpose.msra.mxu0 0.0
    %716 = vmatpush.xpose.msra.mxu0 0.0
    %717 = vmatpush.xpose.msra.mxu0 0.0
    %718 = vmatpush.xpose.msra.mxu0 0.0
    %v719 = vand.u32 %v619, 4294901760
    %720 = vmatpush.xpose.msra.mxu0 %v719
    %v721 = vand.u32 %v617, 4294901760
    %722 = vmatpush.xpose.msra.mxu0 %v721
    %v723 = vand.u32 %v615, 4294901760
    %v724 = vsub.f32 %v615, %v723
    %v725 = vand.u32 %v724, 4294901760
    %726 = vmatmul.f32.gmra.mxu0 %v725
    %v727 = vpop.f32.mrf.mxu0
    %v728 = vadd.f32 %v703, %v727
    %729 = vdwg.mxu0
    %730 = vmatpush.xpose.msra.mxu0 0.0
    %731 = vmatpush.xpose.msra.mxu0 0.0
    %732 = vmatpush.xpose.msra.mxu0 0.0
    %733 = vmatpush.xpose.msra.mxu0 0.0
    %734 = vmatpush.xpose.msra.mxu0 0.0
    %735 = vmatpush.xpose.msra.mxu0 0.0
    %736 = vmatpush.xpose.msra.mxu0 0.0
    %737 = vmatpush.xpose.msra.mxu0 0.0
    %738 = vmatpush.xpose.msra.mxu0 0.0
    %739 = vmatpush.xpose.msra.mxu0 0.0
    %740 = vmatpush.xpose.msra.mxu0 0.0
    %741 = vmatpush.xpose.msra.mxu0 0.0
    %742 = vmatpush.xpose.msra.mxu0 0.0
    %743 = vmatpush.xpose.msra.mxu0 0.0
    %v744 = vand.u32 %v619, 4294901760
    %v745 = vsub.f32 %v619, %v744
    %v746 = vand.u32 %v745, 4294901760
    %747 = vmatpush.xpose.msra.mxu0 %v746
    %v748 = vand.u32 %v617, 4294901760
    %v749 = vsub.f32 %v617, %v748
    %v750 = vand.u32 %v749, 4294901760
    %751 = vmatpush.xpose.msra.mxu0 %v750
    %v752 = vand.u32 %v615, 4294901760
    %753 = vmatmul.f32.gmra.mxu0 %v752
    %v754 = vpop.f32.mrf.mxu0
    %v755 = vadd.f32 %v728, %v754
    %756 = vdwg.mxu0
    %757 = vmatpush.xpose.msra.mxu0 0.0
    %758 = vmatpush.xpose.msra.mxu0 0.0
    %759 = vmatpush.xpose.msra.mxu0 0.0
    %760 = vmatpush.xpose.msra.mxu0 0.0
    %761 = vmatpush.xpose.msra.mxu0 0.0
    %762 = vmatpush.xpose.msra.mxu0 0.0
    %763 = vmatpush.xpose.msra.mxu0 0.0
    %764 = vmatpush.xpose.msra.mxu0 0.0
    %765 = vmatpush.xpose.msra.mxu0 0.0
    %766 = vmatpush.xpose.msra.mxu0 0.0
    %767 = vmatpush.xpose.msra.mxu0 0.0
    %768 = vmatpush.xpose.msra.mxu0 0.0
    %769 = vmatpush.xpose.msra.mxu0 0.0
    %770 = vmatpush.xpose.msra.mxu0 0.0
    %v771 = vand.u32 %v619, 4294901760
    %772 = vmatpush.xpose.msra.mxu0 %v771
    %v773 = vand.u32 %v617, 4294901760
    %774 = vmatpush.xpose.msra.mxu0 %v773
    %v775 = vand.u32 %v615, 4294901760
    %776 = vmatmul.f32.gmra.mxu0 %v775
    %v777 = vpop.f32.mrf.mxu0
    %v778 = vadd.f32 %v755, %v777
    %779 = vdwg.mxu0
    %v780 = vmax.f32 %v778, 0.0
    %vm781 = vcmask 130048
    %v782 = vsel %vm781, %v780, -inf
    %v783 = vrot.slane %v782, 4
    %v784 = vmax.f32 %v782, %v783
    %v785 = vrot.slane %v784, 2
    %v786 = vmax.f32 %v784, %v785
    %v787 = vrot.slane %v786, 1
    %v788 = vmax.f32 %v786, %v787
    %v789 = vsub.f32 %v780, %v788
    %v790 = vmul.f32 %v789, 1.442695
    %v791 = vpow.pop %v790
    %v792 = vsel %vm781, %v791, 0.0
    %v793 = vrot.slane %v792, 4
    %v794 = vadd.f32 %v792, %v793
    %v795 = vrot.slane %v794, 2
    %v796 = vadd.f32 %v794, %v795
    %v797 = vrot.slane %v796, 1
    %v798 = vadd.f32 %v796, %v797
    %v799 = vrcp.pop %v798
    %v800 = vmul.f32 %v798, %v799
    %v801 = vsub.f32 2.0, %v800
    %v802 = vmul.f32 %v799, %v801
    %v803 = vmul.f32 %v791, %v802
    %804 = vst.msk [vmem:[#allocation7] sm:$0xff] %vm781, %v803
    // Predicated region
    $region26: #{tpu_custom_call.1} parent=1 // pred_check
      _
    $region27: #{tpu_custom_call.1} parent=1 // pred_check_branch
      %806 = sbr.rel (0) target = $region29
    $region28: #{tpu_custom_call.1} parent=1 // pred_region
      %808 = vsyncadd [#allocation4], 0
      %s810 = sshll.u32 [#allocation7], 4
      %s811 = int_to_ptr.vmem [resolvable:$true] %s810
      %s812 = sshll.u32 %s4, 4
      %s813 = int_to_ptr.hbm [resolvable:$true] %s812
      %815 = dma.vmem_to_hbm [thread:$0]  %s811, 128, %s813, [#allocation4]
    $region29: #{tpu_custom_call.1} parent=1 // pred_fallthru
      _
    // Predicated region
    $region30: #{tpu_custom_call.1} parent=1 // pred_check
      _
    $region31: #{tpu_custom_call.1} parent=1 // pred_check_branch
      %817 = sbr.rel (0) target = $region33
    $region32: #{tpu_custom_call.1} parent=1 // pred_region
      %819 = dma.done [#allocation4], 128
    $region33: #{tpu_custom_call.1} parent=1 // pred_fallthru
      _
    %820 = vsyncpa [#allocation3], 1
    %821 = vsyncpa [#allocation6], 1
    %822 = vsyncpa [#allocation4], 1

</llo_original>
